<compile_context>
chip_gen: v5e
topology: v5e:2x2
jax: 0.10.0
libtpu: 0.0.40
codegen_flags: <defaults>
</compile_context>

<pallas_src>
import numpy as np
import jax
import jax.numpy as jnp
from jax.experimental import pallas as pl
from jax.experimental.pallas import tpu as pltpu

POOLING_SIZES = (1, 2, 3, 6)
NP_TOTAL = 64          # packed pooled width: sum(p*p) = 50, padded to 64 lanes
NEG_MASK = -1.0e30     # "minus infinity" for cross-branch / padded pooled columns


# --------------------------------------------------------------------------
# Pallas kernel.
#   grid = (B, n_co, n_c); the C axis (innermost) is a reduction into z_acc.
# --------------------------------------------------------------------------
def ppm_kernel(x_ref, a_ref, w_ref, bm_ref, b_ref, out_ref, z_acc):
    # x_ref:   (1, c_tile, HWp)   bf16  input feature tile
    # a_ref:   (HWp, NP)          bf16  fused adaptive-avg-pool operator (grid-invariant)
    # w_ref:   (co_tile, c_tile)  bf16  stacked folded conv+BN weight tile
    # bm_ref:  (co_tile, NP)      f32   bias on own-branch columns, -1e30 elsewhere
    # b_ref:   (NP, HWp)          bf16  fused bilinear-upsample operator (grid-invariant)
    # out_ref: (1, co_tile, HWp)  f32   branch-output channel tile
    # z_acc:   (co_tile, NP)      f32   conv+BN accumulator across C tiles
    k = pl.program_id(2)

    @pl.when(k == 0)
    def _():
        z_acc[...] = jnp.zeros_like(z_acc)

    # 1) Fused adaptive average pooling for this C tile (all 4 branches at once).
    pooled = jnp.dot(x_ref[0], a_ref[...],
                     preferred_element_type=jnp.float32)          # (c_tile, NP) f32

    # 2) Fused 1x1 conv + folded BN, accumulated over C tiles.
    z_acc[...] += jnp.dot(w_ref[...], pooled.astype(jnp.bfloat16),
                          preferred_element_type=jnp.float32)     # (co_tile, NP) f32

    @pl.when(k == pl.num_programs(2) - 1)
    def _():
        # bias add + block-diagonal branch masking in one shot: off-branch and
        # padded pooled columns carry -1e30, so ReLU zeroes them.
        z = jnp.maximum(z_acc[...] + bm_ref[...], 0.0)

        # 3) Fused bilinear upsample for all 4 branches.
        up = jnp.dot(z.astype(jnp.bfloat16), b_ref[...],
                     preferred_element_type=jnp.float32)          # (co_tile, HWp)
        out_ref[0] = up.astype(out_ref.dtype)


# --------------------------------------------------------------------------
# Wrapper.
# --------------------------------------------------------------------------
def _ceil_to(a, b):
    return -(-a // b) * b


def _pick_tile(total, target, quantum):
    """Largest divisor of `total` that is a multiple of `quantum` and <= target."""
    if total <= target:
        return total
    t = min(target, total)
    t -= t % quantum
    while t >= quantum:
        if total % t == 0:
            return t
        t -= quantum
    return total


def _blk_bytes(shape, dtype_bytes):
    # crude upper bound: pad last dim to 128 lanes, second-last to 8 sublanes
    s = list(shape)
    s[-1] = _ceil_to(s[-1], 128)
    if len(s) >= 2:
        s[-2] = _ceil_to(s[-2], 8)
    n = 1
    for d in s:
        n *= d
    return n * dtype_bytes


def pyramid_pooling(x, a_cat, w_stack, b_cat, bias_mask, *, c_tile=None, co_tile=None):
    B, C, H, W = x.shape
    HW = H * W
    CO4, Cw = w_stack.shape
    HWp, NP = a_cat.shape
    assert Cw == C and C % 8 == 0
    assert b_cat.shape == (NP, HWp) and bias_mask.shape == (CO4, NP)
    assert HWp % 128 == 0 and HWp >= HW

    if c_tile is None:
        c_tile = _pick_tile(C, 512, 128)
    if co_tile is None:
        co_tile = _pick_tile(CO4, 512, 8)
    assert C % c_tile == 0 and (c_tile % 128 == 0 or c_tile == C)
    assert CO4 % co_tile == 0 and (co_tile % 8 == 0 or co_tile == CO4)
    n_c = C // c_tile
    n_co = CO4 // co_tile

    # bf16 activations for the branch path (halves input DMA on a mem-bound kernel).
    xf = x.reshape(B, C, HW).astype(jnp.bfloat16)
    if HWp != HW:
        xf = jnp.pad(xf, ((0, 0), (0, 0), (0, HWp - HW)))

    # VMEM budget from the actual working set (double-buffered blocks + scratch).
    vmem_need = (
        2 * _blk_bytes((1, c_tile, HWp), 2)       # x tile
        + 2 * _blk_bytes((HWp, NP), 2)            # a_cat
        + 2 * _blk_bytes((co_tile, c_tile), 2)    # w tile
        + 2 * _blk_bytes((co_tile, NP), 4)        # bias_mask tile
        + 2 * _blk_bytes((NP, HWp), 2)            # b_cat
        + 2 * _blk_bytes((1, co_tile, HWp), 4)    # out tile
        + _blk_bytes((co_tile, NP), 4)            # z scratch
    )
    vmem_limit = int(min(max(int(vmem_need * 1.25) + (2 << 20), 32 << 20), 96 << 20))

    up_flat = pl.pallas_call(
        ppm_kernel,
        out_shape=jax.ShapeDtypeStruct((B, CO4, HWp), jnp.float32),
        grid=(B, n_co, n_c),
        in_specs=[
            pl.BlockSpec((1, c_tile, HWp), lambda b, j, k: (b, k, 0)),
            pl.BlockSpec((HWp, NP), lambda b, j, k: (0, 0)),        # grid-invariant
            pl.BlockSpec((co_tile, c_tile), lambda b, j, k: (j, k)),
            pl.BlockSpec((co_tile, NP), lambda b, j, k: (j, 0)),
            pl.BlockSpec((NP, HWp), lambda b, j, k: (0, 0)),        # grid-invariant
        ],
        out_specs=pl.BlockSpec((1, co_tile, HWp), lambda b, j, k: (b, j, 0)),
        scratch_shapes=[pltpu.VMEM((co_tile, NP), jnp.float32)],
        compiler_params=pltpu.CompilerParams(
            dimension_semantics=("parallel", "parallel", "arbitrary"),
            vmem_limit_bytes=vmem_limit,
        ),
    )(xf, a_cat, w_stack, bias_mask, b_cat)

    up = up_flat[:, :, :HW].reshape(B, CO4, H, W)
    # passthrough concat lives in the wrapper (XLA), not the kernel.
    return jnp.concatenate([x, up], axis=1)


# --------------------------------------------------------------------------
# Parameter / operator construction (plain numpy glue).
# --------------------------------------------------------------------------
def adaptive_pool_matrix(out_size, in_size):
    # PyTorch AdaptiveAvgPool2d bins: [floor(i*in/out), ceil((i+1)*in/out))
    P = np.zeros((out_size, in_size), np.float32)
    for i in range(out_size):
        s = (i * in_size) // out_size
        e = -((-(i + 1) * in_size) // out_size)
        P[i, s:e] = 1.0 / (e - s)
    return P


def bilinear_matrix(out_size, in_size):
    # F.interpolate(mode='bilinear', align_corners=False)
    U = np.zeros((out_size, in_size), np.float32)
    scale = in_size / out_size
    for y in range(out_size):
        src = (y + 0.5) * scale - 0.5
        if src < 0.0:
            src = 0.0
        i0 = min(int(np.floor(src)), in_size - 1)
        i1 = min(i0 + 1, in_size - 1)
        lam = src - i0
        U[y, i0] += 1.0 - lam
        U[y, i1] += lam
    return U


def build_params(key, in_channels, H, W, pooling_sizes=POOLING_SIZES, eps=1e-5):
    Cout = in_channels // 4
    HW = H * W
    HWp = _ceil_to(HW, 128)
    nb = len(pooling_sizes)
    total_cols = sum(p * p for p in pooling_sizes)
    assert total_cols <= NP_TOTAL, "pooling sizes exceed packed pooled width"

    A_cat = np.zeros((HWp, NP_TOTAL), np.float32)
    B_cat = np.zeros((NP_TOTAL, HWp), np.float32)
    W_stack = np.zeros((nb * Cout, in_channels), np.float32)
    bias_mask = np.full((nb * Cout, NP_TOTAL), NEG_MASK, np.float32)

    col = 0
    for kb, p in enumerate(pooling_sizes):
        key, k1, k2, k3, k4, k5 = jax.random.split(key, 6)
        # deterministic synthetic parameters (shapes from the module __init__)
        w_conv = np.asarray(jax.random.normal(k1, (Cout, in_channels)) * 0.1, np.float32)
        gamma = np.asarray(jax.random.uniform(k2, (Cout,), minval=0.5, maxval=1.5), np.float32)
        beta = np.asarray(jax.random.normal(k3, (Cout,)) * 0.1, np.float32)
        mu = np.asarray(jax.random.normal(k4, (Cout,)) * 0.1, np.float32)
        var = np.asarray(jax.random.uniform(k5, (Cout,), minval=0.5, maxval=1.5), np.float32)

        scale = gamma / np.sqrt(var + eps)
        w_f = w_conv * scale[:, None]              # (Cout, Cin) folded conv+BN
        b_f = beta - mu * scale                    # (Cout,)

        Ph = adaptive_pool_matrix(p, H)
        Pw = adaptive_pool_matrix(p, W)
        Uh = bilinear_matrix(H, p)
        Uw = bilinear_matrix(W, p)

        A = np.kron(Ph, Pw).T                      # (HW, p*p)
        Bm = np.kron(Uh, Uw).T                     # (p*p, HW)

        pp = p * p
        A_cat[:HW, col:col + pp] = A
        B_cat[col:col + pp, :HW] = Bm
        W_stack[kb * Cout:(kb + 1) * Cout, :] = w_f
        bias_mask[kb * Cout:(kb + 1) * Cout, col:col + pp] = b_f[:, None]
        col += pp

    # Kernel invariant: padded pooled columns must have zero upsample rows
    # (on top of the -1e30 bias mask that already zeroes them post-ReLU).
    assert np.all(B_cat[col:, :] == 0.0)

    # bf16 operators (halves operator DMA bytes, native MXU input); f32 bias/mask.
    a_bf = jnp.asarray(A_cat, jnp.bfloat16)
    w_bf = jnp.asarray(W_stack, jnp.bfloat16)
    b_bf = jnp.asarray(B_cat, jnp.bfloat16)
    bm_f32 = jnp.asarray(bias_mask, jnp.float32)

    # f32 copies of the bf16-rounded operators for the pure-JAX reference.
    raw = []
    col = 0
    for kb, p in enumerate(pooling_sizes):
        pp = p * p
        A_r = a_bf[:HW, col:col + pp].astype(jnp.float32)
        B_r = b_bf[col:col + pp, :HW].astype(jnp.float32)
        W_r = w_bf[kb * Cout:(kb + 1) * Cout, :].astype(jnp.float32)
        bias_r = jnp.asarray(bias_mask[kb * Cout:(kb + 1) * Cout, col:col + 1])  # (Cout, 1)
        raw.append((A_r, B_r, W_r, bias_r))
        col += pp

    return (a_bf, w_bf, b_bf, bm_f32), raw


def reference(x, raw_ops):
    # pure-JAX, per-branch reference mirroring the PyTorch module's forward.
    B, C, H, W = x.shape
    # mirror the wrapper: activations enter the branch path as bf16
    xf = x.reshape(B, C, H * W).astype(jnp.bfloat16).astype(jnp.float32)
    hi = jax.lax.Precision.HIGHEST
    outs = [x]
    for (A, Bm, Wf, bf) in raw_ops:
        pooled = jnp.einsum('bch,hp->bcp', xf, A, precision=hi)
        z = jnp.einsum('oc,bcp->bop', Wf, pooled, precision=hi) + bf[None]
        z = jnp.maximum(z, 0.0)
        up = jnp.einsum('bop,ph->boh', z, Bm, precision=hi)
        outs.append(up.reshape(B, -1, H, W))
    return jnp.concatenate(outs, axis=1)


if __name__ == "__main__":
    key = jax.random.PRNGKey(0)
    kx, kp = jax.random.split(key)

    # Scaled-down PSPNet shape (real model: C=2048).  C=256 -> Cout=64 per
    # branch, CO4=256; c_tile=128 / co_tile=64 exercise both the C-reduction
    # accumulator and the output-channel tiling (grid = (2, 4, 2)).
    B, C, H, W = 2, 256, 16, 16
    x = jax.random.normal(kx, (B, C, H, W), dtype=jnp.float32)

    (a_cat, w_stack, b_cat, bias_mask), raw_ops = build_params(kp, C, H, W)

    out = jax.block_until_ready(
        pyramid_pooling(x, a_cat, w_stack, b_cat, bias_mask, c_tile=128, co_tile=64))
    ref = jax.block_until_ready(reference(x, raw_ops))

    assert out.shape == (B, 2 * C, H, W), out.shape
    err = float(np.max(np.abs(np.asarray(out) - np.asarray(ref))))
    # bf16 pooled/z intermediates inside the kernel (reference keeps them f32)
    # -> loose tolerance.
    assert np.allclose(np.asarray(out), np.asarray(ref), atol=4e-2, rtol=4e-2), err

    print("KERNEL_OK")
</pallas_src>

<mosaic_0001>
module attributes {stable_mosaic.version = 11 : i64} {
  func.func @ppm_kernel(%arg0: i32, %arg1: i32, %arg2: i32, %arg3: memref<1x128x256xbf16, #tpu.memory_space<vmem>>, %arg4: memref<256x64xbf16, #tpu.memory_space<vmem>>, %arg5: memref<64x128xbf16, #tpu.memory_space<vmem>>, %arg6: memref<64x64xf32, #tpu.memory_space<vmem>>, %arg7: memref<64x256xbf16, #tpu.memory_space<vmem>>, %arg8: memref<1x64x256xf32, #tpu.memory_space<vmem>>, %arg9: memref<64x64xf32, #tpu.memory_space<vmem>>) attributes {dimension_semantics = [#tpu.dimension_semantics<parallel>, #tpu.dimension_semantics<parallel>, #tpu.dimension_semantics<arbitrary>], iteration_bounds = array<i64: 2, 4, 2>, scalar_prefetch = 0 : i64, scratch_operands = 1 : i64, tpu.core_type = #tpu.core_type<tc>, window_params = [{transform_indices = @transform_0, window_bounds = array<i64: 1, 128, 256>}, {pipeline_mode = #tpu.pipeline_mode<synchronous>, transform_indices = @transform_1, window_bounds = array<i64: 256, 64>}, {transform_indices = @transform_2, window_bounds = array<i64: 64, 128>}, {transform_indices = @transform_3, window_bounds = array<i64: 64, 64>}, {pipeline_mode = #tpu.pipeline_mode<synchronous>, transform_indices = @transform_4, window_bounds = array<i64: 64, 256>}, {transform_indices = @transform_5, window_bounds = array<i64: 1, 64, 256>}]} {
    %c0_i32 = arith.constant 0 : i32
    %0 = arith.cmpi eq, %arg2, %c0_i32 : i32
    %1 = arith.extui %0 : i1 to i32
    %c0_i32_0 = arith.constant 0 : i32
    %2 = arith.cmpi ne, %1, %c0_i32_0 : i32
    scf.if %2 {
      %cst_13 = arith.constant 0.000000e+00 : f32
      %16 = vector.broadcast %cst_13 : f32 to vector<64x64xf32>
      %c0_14 = arith.constant 0 : index
      %c0_15 = arith.constant 0 : index
      %17 = vector.load %arg9[%c0_14, %c0_15] : memref<64x64xf32, #tpu.memory_space<vmem>>, vector<64x64xf32>
      tpu.vector_store %arg9[%c0_14, %c0_15], %16 {strides = array<i32>} : memref<64x64xf32, #tpu.memory_space<vmem>>, vector<64x64xf32>,
    } else {
    }
    %c0 = arith.constant 0 : index
    %c0_1 = arith.constant 0 : index
    %c0_2 = arith.constant 0 : index
    %3 = vector.load %arg3[%c0, %c0_1, %c0_2] : memref<1x128x256xbf16, #tpu.memory_space<vmem>>, vector<1x128x256xbf16>
    %4 = vector.shape_cast %3 : vector<1x128x256xbf16> to vector<128x256xbf16>
    %c0_3 = arith.constant 0 : index
    %c0_4 = arith.constant 0 : index
    %5 = vector.load %arg4[%c0_3, %c0_4] : memref<256x64xbf16, #tpu.memory_space<vmem>>, vector<256x64xbf16>
    %cst = arith.constant dense<0.000000e+00> : vector<128x64xf32>
    %6 = tpu.matmul %4, %5, %cst {dimension_numbers = #tpu.dot_dimension_numbers<[1], [0], [0], [1], [0, 0, 1, 1], [], []>} : vector<128x256xbf16>, vector<256x64xbf16>, vector<128x64xf32> -> vector<128x64xf32>
    %c0_5 = arith.constant 0 : index
    %c0_6 = arith.constant 0 : index
    %7 = vector.load %arg9[%c0_5, %c0_6] : memref<64x64xf32, #tpu.memory_space<vmem>>, vector<64x64xf32>
    %c0_7 = arith.constant 0 : index
    %c0_8 = arith.constant 0 : index
    %8 = vector.load %arg5[%c0_7, %c0_8] : memref<64x128xbf16, #tpu.memory_space<vmem>>, vector<64x128xbf16>
    %9 = arith.truncf %6 : vector<128x64xf32> to vector<128x64xbf16>
    %cst_9 = arith.constant dense<0.000000e+00> : vector<64x64xf32>
    %10 = tpu.matmul %8, %9, %cst_9 {dimension_numbers = #tpu.dot_dimension_numbers<[1], [0], [0], [1], [0, 0, 1, 1], [], []>} : vector<64x128xbf16>, vector<128x64xbf16>, vector<64x64xf32> -> vector<64x64xf32>
    %11 = arith.addf %7, %10 : vector<64x64xf32>
    %c0_10 = arith.constant 0 : index
    %c0_11 = arith.constant 0 : index
    %12 = vector.load %arg9[%c0_10, %c0_11] : memref<64x64xf32, #tpu.memory_space<vmem>>, vector<64x64xf32>
    tpu.vector_store %arg9[%c0_10, %c0_11], %11 {strides = array<i32>} : memref<64x64xf32, #tpu.memory_space<vmem>>, vector<64x64xf32>,
    %c1_i32 = arith.constant 1 : i32
    %13 = arith.cmpi eq, %arg2, %c1_i32 : i32
    %14 = arith.extui %13 : i1 to i32
    %c0_i32_12 = arith.constant 0 : i32
    %15 = arith.cmpi ne, %14, %c0_i32_12 : i32
    scf.if %15 {
      %c0_13 = arith.constant 0 : index
      %c0_14 = arith.constant 0 : index
      %16 = vector.load %arg9[%c0_13, %c0_14] : memref<64x64xf32, #tpu.memory_space<vmem>>, vector<64x64xf32>
      %c0_15 = arith.constant 0 : index
      %c0_16 = arith.constant 0 : index
      %17 = vector.load %arg6[%c0_15, %c0_16] : memref<64x64xf32, #tpu.memory_space<vmem>>, vector<64x64xf32>
      %18 = arith.addf %16, %17 : vector<64x64xf32>
      %cst_17 = arith.constant 0.000000e+00 : f32
      %19 = vector.broadcast %cst_17 : f32 to vector<64x64xf32>
      %20 = arith.maximumf %18, %19 : vector<64x64xf32>
      %21 = arith.truncf %20 : vector<64x64xf32> to vector<64x64xbf16>
      %c0_18 = arith.constant 0 : index
      %c0_19 = arith.constant 0 : index
      %22 = vector.load %arg7[%c0_18, %c0_19] : memref<64x256xbf16, #tpu.memory_space<vmem>>, vector<64x256xbf16>
      %cst_20 = arith.constant dense<0.000000e+00> : vector<64x256xf32>
      %23 = tpu.matmul %21, %22, %cst_20 {dimension_numbers = #tpu.dot_dimension_numbers<[1], [0], [0], [1], [0, 0, 1, 1], [], []>} : vector<64x64xbf16>, vector<64x256xbf16>, vector<64x256xf32> -> vector<64x256xf32>
      %c0_21 = arith.constant 0 : index
      %c0_22 = arith.constant 0 : index
      %c0_23 = arith.constant 0 : index
      %24 = vector.load %arg8[%c0_21, %c0_22, %c0_23] : memref<1x64x256xf32, #tpu.memory_space<vmem>>, vector<1x64x256xf32>
      %25 = vector.shape_cast %24 : vector<1x64x256xf32> to vector<64x256xf32>
      %26 = vector.shape_cast %23 : vector<64x256xf32> to vector<1x64x256xf32>
      tpu.vector_store %arg8[%c0_21, %c0_22, %c0_23], %26 {strides = array<i32>} : memref<1x64x256xf32, #tpu.memory_space<vmem>>, vector<1x64x256xf32>,
    } else {
    }
    return
  }
  func.func @transform_0(%arg0: i32, %arg1: i32, %arg2: i32) -> (i32, i32, i32) {
    %c0_i32 = arith.constant 0 : i32
    %c0_i32_0 = arith.constant 0 : i32
    return %arg0, %arg2, %c0_i32 : i32, i32, i32
  }
  func.func @transform_1(%arg0: i32, %arg1: i32, %arg2: i32) -> (i32, i32) {
    %c0_i32 = arith.constant 0 : i32
    %c0_i32_0 = arith.constant 0 : i32
    %c0_i32_1 = arith.constant 0 : i32
    return %c0_i32, %c0_i32_0 : i32, i32
  }
  func.func @transform_2(%arg0: i32, %arg1: i32, %arg2: i32) -> (i32, i32) {
    %c0_i32 = arith.constant 0 : i32
    return %arg1, %arg2 : i32, i32
  }
  func.func @transform_3(%arg0: i32, %arg1: i32, %arg2: i32) -> (i32, i32) {
    %c0_i32 = arith.constant 0 : i32
    %c0_i32_0 = arith.constant 0 : i32
    return %arg1, %c0_i32 : i32, i32
  }
  func.func @transform_4(%arg0: i32, %arg1: i32, %arg2: i32) -> (i32, i32) {
    %c0_i32 = arith.constant 0 : i32
    %c0_i32_0 = arith.constant 0 : i32
    %c0_i32_1 = arith.constant 0 : i32
    return %c0_i32, %c0_i32_0 : i32, i32
  }
  func.func @transform_5(%arg0: i32, %arg1: i32, %arg2: i32) -> (i32, i32, i32) {
    %c0_i32 = arith.constant 0 : i32
    %c0_i32_0 = arith.constant 0 : i32
    return %arg0, %arg1, %c0_i32 : i32, i32, i32
  }
}

</mosaic_0001>

<llo_original>
// kernel: tpu_custom_call.1
$region0: #{tpu_custom_call.1}
  #allocation0 [shape = 'u32[]', space=smem, size = 0x4, offset = 0x4, fixed_abs, tag = 'smem constant byte address 0x4 - core index']
  #allocation1 [shape = 'u32[72,128]{1,0:T(1,128)}', space=vmem, size = 0x9000, scoped, tag = 'internal scratch']
  #allocation2 [shape = 'f32[64,64]{1,0:T(8,128)}', space=vmem, size = 0x8000, scoped, tag = 'scratch operand']
  %s0 = inlined_call_operand.hbm [shape: bf16[2,256,256], index: 0, kind: input, shape index: {}]
  %s1 = inlined_call_operand.vmem [shape: bf16[256,64], index: 1, kind: input, shape index: {}]
  %s2 = inlined_call_operand.vmem [shape: bf16[256,256], index: 2, kind: input, shape index: {}]
  %s3 = inlined_call_operand.vmem [shape: f32[256,64], index: 3, kind: input, shape index: {}]
  %s4 = inlined_call_operand.vmem [shape: bf16[64,256], index: 4, kind: input, shape index: {}]
  %s5 = inlined_call_operand.hbm [shape: f32[2,256,256], index: 5, kind: output, shape index: {}]
  %s6 = sld [smem:[#allocation0]]
  $region106: #{tpu_custom_call.1} parent=0
    _
  %s8 = ssub.s32 1, %s6
  %s9 = scalar_select 0, %s8, %s6
  $region1: #{tpu_custom_call.1} parent=0
    #allocation3 [shape = 'u8[131072]{0}', space=vmem, size = 0x20000, scoped, tag = 'input window, operand 0']
    #allocation4 [shape = 's32[2]{0}', space=sflag, size = 0x8, scoped, tag = 'scoped memory for tpu_custom_call.1']
    #allocation5 [shape = 's32[2]{0}', space=sflag, size = 0x8, scoped, tag = 'scoped memory for tpu_custom_call.1']
    #allocation6 [shape = 'u8[32768]{0}', space=vmem, size = 0x8000, scoped, tag = 'input window, operand 2']
    #allocation7 [shape = 'u8[131072]{0}', space=vmem, size = 0x20000, scoped, tag = 'output window, operand 0']
    %10 = vsyncpa [#allocation4], 0
    %s11 = scalar_lea.sflag [#allocation4], 1
    %12 = vsyncpa %s11, 0
    %13 = vsyncpa [#allocation5], 0
    %s14 = scalar_lea.sflag [#allocation5], 1
    %15 = vsyncpa %s14, 0
    loop: start=0, step=1, limit=18
    $region2: #{tpu_custom_call.1} parent=1 // loop_pre_header
      _
    $region3: #{tpu_custom_call.1} parent=1 // loop_header
      %s17 = sphi 0, %s21
      %p18 = scmp.ge.s32.totalorder %s17, 18
      %s24 = sphi 0, %s43
      %s25 = sphi 0, %s39
      %s26 = sphi 0, %s35
      %s27 = sphi 0, %s24
      %s28 = sphi 0, %s25
      %s29 = sphi 0, %s26
      %s30 = sphi 0, %s27
      %s31 = sphi 0, %s28
      %s32 = sphi 0, %s29
      %s48 = sphi 0, %s50
      %s51 = sphi 0, %s48
      %s52 = sphi 0, %s51
      %s68 = sphi 0, %s52
      %s72 = sphi 0, %s72
      %s74 = sphi 0, %s72
      %s75 = sphi 0, %s74
      %s89 = sphi 0, %s75
      %s97 = sphi 0, %s99
      %s100 = sphi 0, %s97
      %s101 = sphi 0, %s100
      %s117 = sphi 0, %s101
      %s123 = sphi 0, %s125
      %s126 = sphi 0, %s123
      %s127 = sphi 0, %s126
      %s143 = sphi 0, %s127
      %s147 = sphi 0, %s147
      %s149 = sphi 0, %s147
      %s150 = sphi 0, %s149
      %s164 = sphi 0, %s150
      %s172 = sphi 0, %s174
      %s175 = sphi 0, %s172
      %s176 = sphi 0, %s175
      %s192 = sphi 0, %s176
    $region4: #{tpu_custom_call.1} parent=1 // loop_header_branch
      %20 = sbr.rel (%p18) target = $region8
    $region5: #{tpu_custom_call.1} parent=1 // loop_body
      %s22 = ssub.s32 %s17, 1
      %s23 = ssub.s32 %s17, 2
      %s33 = sadd.s32 1, %s26
      %p34 = scmp.ge.s32.totalorder %s33, 2
      %s35 = scalar_select %p34, 0, %s33
      %s36 = sadd.s32 1, %s25
      %s37 = scalar_select %p34, %s36, %s25
      %p38 = scmp.ge.s32.totalorder %s37, 4
      %s39 = scalar_select %p38, 0, %s37
      %s40 = sadd.s32 1, %s24
      %s41 = scalar_select %p38, %s40, %s24
      %p42 = scmp.ge.s32.totalorder %s41, 2
      %s43 = scalar_select %p42, 0, %s41
      %s44 = ssub.s32 %s24, %s43
      %s45 = ssub.s32 %s26, %s35
      %s46 = sor.u32 %s44, %s45
      %p47 = scmp.eq.s32.totalorder %s46, 0
      %s49 = sadd.s32 %s48, 1
      %s50 = scalar_select %p47, %s48, %s49
      %p53 = pneg %p47
      %p54 = scmp.eq.s32.totalorder %s17, 15
      %p55 = por %p53, %p54
      %p56 = scmp.ne.s32.totalorder %s48, %s51
      %p57 = scmp.eq.s32.totalorder %s17, 0
      %p58 = por %p56, %p57
      %p59 = scmp.ne.s32.totalorder %s48, %s51
      %p60 = scmp.eq.s32.totalorder %s22, 15
      %p61 = por %p59, %p60
      %p62 = scmp.ne.s32.totalorder %s51, %s52
      %p63 = scmp.eq.s32.totalorder %s22, 0
      %p64 = por %p62, %p63
      %p65 = scmp.ne.s32.totalorder %s51, %s52
      %p66 = scmp.eq.s32.totalorder %s23, 15
      %p67 = por %p65, %p66
      %p69 = scmp.ne.s32.totalorder %s52, %s68
      %p70 = scmp.eq.s32.totalorder %s23, 0
      %p71 = por %p69, %p70
      %s73 = sadd.s32 %s72, 1
      %p76 = scmp.eq.s32.totalorder %s17, 15
      %p77 = scmp.ne.s32.totalorder %s72, %s74
      %p78 = scmp.eq.s32.totalorder %s17, 0
      %p79 = por %p77, %p78
      %p80 = scmp.ne.s32.totalorder %s72, %s74
      %p81 = scmp.eq.s32.totalorder %s22, 15
      %p82 = por %p80, %p81
      %p83 = scmp.ne.s32.totalorder %s74, %s75
      %p84 = scmp.eq.s32.totalorder %s22, 0
      %p85 = por %p83, %p84
      %p86 = scmp.ne.s32.totalorder %s74, %s75
      %p87 = scmp.eq.s32.totalorder %s23, 15
      %p88 = por %p86, %p87
      %p90 = scmp.ne.s32.totalorder %s75, %s89
      %p91 = scmp.eq.s32.totalorder %s23, 0
      %p92 = por %p90, %p91
      %s93 = ssub.s32 %s25, %s39
      %s94 = ssub.s32 %s26, %s35
      %s95 = sor.u32 %s93, %s94
      %p96 = scmp.eq.s32.totalorder %s95, 0
      %s98 = sadd.s32 %s97, 1
      %s99 = scalar_select %p96, %s97, %s98
      %p102 = pneg %p96
      %p103 = scmp.eq.s32.totalorder %s17, 15
      %p104 = por %p102, %p103
      %p105 = scmp.ne.s32.totalorder %s97, %s100
      %p106 = scmp.eq.s32.totalorder %s17, 0
      %p107 = por %p105, %p106
      %p108 = scmp.ne.s32.totalorder %s97, %s100
      %p109 = scmp.eq.s32.totalorder %s22, 15
      %p110 = por %p108, %p109
      %p111 = scmp.ne.s32.totalorder %s100, %s101
      %p112 = scmp.eq.s32.totalorder %s22, 0
      %p113 = por %p111, %p112
      %p114 = scmp.ne.s32.totalorder %s100, %s101
      %p115 = scmp.eq.s32.totalorder %s23, 15
      %p116 = por %p114, %p115
      %p118 = scmp.ne.s32.totalorder %s101, %s117
      %p119 = scmp.eq.s32.totalorder %s23, 0
      %p120 = por %p118, %p119
      %s121 = ssub.s32 %s25, %s39
      %p122 = scmp.eq.s32.totalorder %s121, 0
      %s124 = sadd.s32 %s123, 1
      %s125 = scalar_select %p122, %s123, %s124
      %p128 = pneg %p122
      %p129 = scmp.eq.s32.totalorder %s17, 15
      %p130 = por %p128, %p129
      %p131 = scmp.ne.s32.totalorder %s123, %s126
      %p132 = scmp.eq.s32.totalorder %s17, 0
      %p133 = por %p131, %p132
      %p134 = scmp.ne.s32.totalorder %s123, %s126
      %p135 = scmp.eq.s32.totalorder %s22, 15
      %p136 = por %p134, %p135
      %p137 = scmp.ne.s32.totalorder %s126, %s127
      %p138 = scmp.eq.s32.totalorder %s22, 0
      %p139 = por %p137, %p138
      %p140 = scmp.ne.s32.totalorder %s126, %s127
      %p141 = scmp.eq.s32.totalorder %s23, 15
      %p142 = por %p140, %p141
      %p144 = scmp.ne.s32.totalorder %s127, %s143
      %p145 = scmp.eq.s32.totalorder %s23, 0
      %p146 = por %p144, %p145
      %s148 = sadd.s32 %s147, 1
      %p151 = scmp.eq.s32.totalorder %s17, 15
      %p152 = scmp.ne.s32.totalorder %s147, %s149
      %p153 = scmp.eq.s32.totalorder %s17, 0
      %p154 = por %p152, %p153
      %p155 = scmp.ne.s32.totalorder %s147, %s149
      %p156 = scmp.eq.s32.totalorder %s22, 15
      %p157 = por %p155, %p156
      %p158 = scmp.ne.s32.totalorder %s149, %s150
      %p159 = scmp.eq.s32.totalorder %s22, 0
      %p160 = por %p158, %p159
      %p161 = scmp.ne.s32.totalorder %s149, %s150
      %p162 = scmp.eq.s32.totalorder %s23, 15
      %p163 = por %p161, %p162
      %p165 = scmp.ne.s32.totalorder %s150, %s164
      %p166 = scmp.eq.s32.totalorder %s23, 0
      %p167 = por %p165, %p166
      %s168 = ssub.s32 %s24, %s43
      %s169 = ssub.s32 %s25, %s39
      %s170 = sor.u32 %s168, %s169
      %p171 = scmp.eq.s32.totalorder %s170, 0
      %s173 = sadd.s32 %s172, 1
      %s174 = scalar_select %p171, %s172, %s173
      %p177 = pneg %p171
      %p178 = scmp.eq.s32.totalorder %s17, 15
      %p179 = por %p177, %p178
      %p180 = scmp.ne.s32.totalorder %s172, %s175
      %p181 = scmp.eq.s32.totalorder %s17, 0
      %p182 = por %p180, %p181
      %p183 = scmp.ne.s32.totalorder %s172, %s175
      %p184 = scmp.eq.s32.totalorder %s22, 15
      %p185 = por %p183, %p184
      %p186 = scmp.ne.s32.totalorder %s175, %s176
      %p187 = scmp.eq.s32.totalorder %s22, 0
      %p188 = por %p186, %p187
      %p189 = scmp.ne.s32.totalorder %s175, %s176
      %p190 = scmp.eq.s32.totalorder %s23, 15
      %p191 = por %p189, %p190
      %p193 = scmp.ne.s32.totalorder %s176, %s192
      %p194 = scmp.eq.s32.totalorder %s23, 0
      %p195 = por %p193, %p194
      %p196 = scmp.le.s32.totalorder 1, %s17
      %p197 = scmp.lt.s32.totalorder %s17, 17
      %p198 = pnand %p196, %p197
      %p199 = pneg %p198
      // Predicated region
      $region9: #{tpu_custom_call.1} parent=5 // pred_check
        _
      $region10: #{tpu_custom_call.1} parent=5 // pred_check_branch
        %201 = sbr.rel (%p198) target = $region12
      $region11: #{tpu_custom_call.1} parent=5 // pred_region
        %s202 = ssub.s32 %s17, 1
        // Predicated region
        $region13: #{tpu_custom_call.1} parent=11 // pred_check
          %p203 = pneg %p85
        $region14: #{tpu_custom_call.1} parent=11 // pred_check_branch
          %205 = sbr.rel (%p203) target = $region16
        $region15: #{tpu_custom_call.1} parent=11 // pred_region
          _
        $region16: #{tpu_custom_call.1} parent=11 // pred_fallthru
          _
        // Predicated region
        $region17: #{tpu_custom_call.1} parent=11 // pred_check
          %p206 = pneg %p160
        $region18: #{tpu_custom_call.1} parent=11 // pred_check_branch
          %208 = sbr.rel (%p206) target = $region20
        $region19: #{tpu_custom_call.1} parent=11 // pred_region
          _
        $region20: #{tpu_custom_call.1} parent=11 // pred_fallthru
          _
      $region12: #{tpu_custom_call.1} parent=5 // pred_fallthru
        _
      %p209 = scmp.lt.s32.totalorder %s17, 16
      // Predicated region
      $region21: #{tpu_custom_call.1} parent=5 // pred_check
        %p210 = pneg %p209
      $region22: #{tpu_custom_call.1} parent=5 // pred_check_branch
        %212 = sbr.rel (%p210) target = $region24
      $region23: #{tpu_custom_call.1} parent=5 // pred_region
        // Predicated region
        $region25: #{tpu_custom_call.1} parent=23 // pred_check
          %p213 = pneg %p58
        $region26: #{tpu_custom_call.1} parent=23 // pred_check_branch
          %215 = sbr.rel (%p213) target = $region28
        $region27: #{tpu_custom_call.1} parent=23 // pred_region
          %s216 = sand.u32 %s48, 1
          %s217 = scalar_lea.sflag [#allocation4], %s216
          %s218 = sand.u32 %s48, 1
          %s219 = smul.addr %s218, 128
          %s220 = scalar_lea.vmem [#allocation3], %s219
          %s221 = smul.u32 16, %s26
          %223 = vsyncadd %s217, 0
          %s224 = smul.addr %s221, 2
          %s225 = smul.addr %s24, 64
          %s226 = sadd.s32 %s224, %s225
          %s227 = smul.addr %s226, 4
          %s228 = scalar_lea.hbm %s0, %s227
          %s229 = sshll.u32 %s228, 4
          %s230 = int_to_ptr.hbm [resolvable:$true] %s229
          %s231 = sshll.u32 %s220, 4
          %s232 = int_to_ptr.vmem [resolvable:$true] %s231
          %237 = dma.hbm_to_vmem [thread:$0]  %s230, 2048, %s232, %s217, 128, 128, 8
        $region28: #{tpu_custom_call.1} parent=23 // pred_fallthru
          _
        // Predicated region
        $region29: #{tpu_custom_call.1} parent=23 // pred_check
          %p238 = pneg %p107
        $region30: #{tpu_custom_call.1} parent=23 // pred_check_branch
          %240 = sbr.rel (%p238) target = $region32
        $region31: #{tpu_custom_call.1} parent=23 // pred_region
          %s241 = sand.u32 %s97, 1
          %s242 = sand.u32 %s97, 1
          %s243 = smul.addr %s242, 32
          %s244 = scalar_lea.vmem [#allocation6], %s243
          %s245 = smul.u32 8, %s25
          %s246 = smul.addr %s245, 2
          %s247 = sadd.s32 %s26, %s246
          %s248 = smul.addr %s247, 4
          %s249 = scalar_lea.vmem %s2, %s248
          // Predicated region
          $region33: #{tpu_custom_call.1} parent=31 // pred_check
            _
          $region34: #{tpu_custom_call.1} parent=31 // pred_check_branch
            %251 = sbr.rel (0) target = $region36
          $region35: #{tpu_custom_call.1} parent=31 // pred_region
            // Predicated region
            $region37: #{tpu_custom_call.1} parent=35 // pred_check
              _
            $region38: #{tpu_custom_call.1} parent=35 // pred_check_branch
              %253 = sbr.rel target = $region40
            $region39: #{tpu_custom_call.1} parent=35 // pred_region
              // Predicated region
              $region52: #{tpu_custom_call.1} parent=39 // pred_check
                _
              $region53: #{tpu_custom_call.1} parent=39 // pred_check_branch
                %283 = sbr.rel (0) target = $region55
              $region54: #{tpu_custom_call.1} parent=39 // pred_region
                loop: start=0, step=1, limit=1
                $region56: #{tpu_custom_call.1} parent=54 // loop_pre_header
                  _
                $region57: #{tpu_custom_call.1} parent=54 // loop_header
                  %s285 = sphi 0, %s289
                  %p286 = scmp.ge.s32.totalorder %s285, 1
                  %s290 = sphi %s249, %s249
                  %s291 = sphi %s244, %s244
                $region58: #{tpu_custom_call.1} parent=54 // loop_header_branch
                  %288 = sbr.rel (%p286) target = $region62
                $region59: #{tpu_custom_call.1} parent=54 // loop_body
                  _
                $region60: #{tpu_custom_call.1} parent=54 // loop_footer
                  %s289 = sadd.s32 1, %s285
                $region61: #{tpu_custom_call.1} parent=54 // loop_footer_branch
                  %284 = sbr.rel target = $region57
                $region62: #{tpu_custom_call.1} parent=54 // loop_exit
                  _
                %s293 = ssub.s32 16, 1
                loop: start=0, step=1, limit=1
                $region63: #{tpu_custom_call.1} parent=54 // loop_pre_header
                  _
                $region64: #{tpu_custom_call.1} parent=54 // loop_header
                  %s295 = sphi 0, %s299
                  %p296 = scmp.ge.s32.totalorder %s295, 1
                  %s300 = sphi %s249, %s249
                  %s301 = sphi %s244, %s244
                $region65: #{tpu_custom_call.1} parent=54 // loop_header_branch
                  %298 = sbr.rel (%p296) target = $region69
                $region66: #{tpu_custom_call.1} parent=54 // loop_body
                  %v302 = vld [vmem:[%s300] sm:%s293]
                  %303 = vst [vmem:[%s301] sm:%s293] %v302
                  %v304 = vld [vmem:[%s300 + $0x8] sm:%s293]
                  %305 = vst [vmem:[%s301 + $0x4] sm:%s293] %v304
                  %v306 = vld [vmem:[%s300 + $0x10] sm:%s293]
                  %307 = vst [vmem:[%s301 + $0x8] sm:%s293] %v306
                  %v308 = vld [vmem:[%s300 + $0x18] sm:%s293]
                  %309 = vst [vmem:[%s301 + $0xc] sm:%s293] %v308
                  %v310 = vld [vmem:[%s300 + $0x20] sm:%s293]
                  %311 = vst [vmem:[%s301 + $0x10] sm:%s293] %v310
                  %v312 = vld [vmem:[%s300 + $0x28] sm:%s293]
                  %313 = vst [vmem:[%s301 + $0x14] sm:%s293] %v312
                  %v314 = vld [vmem:[%s300 + $0x30] sm:%s293]
                  %315 = vst [vmem:[%s301 + $0x18] sm:%s293] %v314
                  %v316 = vld [vmem:[%s300 + $0x38] sm:%s293]
                  %317 = vst [vmem:[%s301 + $0x1c] sm:%s293] %v316
                $region67: #{tpu_custom_call.1} parent=54 // loop_footer
                  %s299 = sadd.s32 1, %s295
                $region68: #{tpu_custom_call.1} parent=54 // loop_footer_branch
                  %294 = sbr.rel target = $region64
                $region69: #{tpu_custom_call.1} parent=54 // loop_exit
                  _
              $region55: #{tpu_custom_call.1} parent=39 // pred_fallthru
                _
            $region40: #{tpu_custom_call.1} parent=35 // pred_fallthru
              _
            // Predicated region
            $region41: #{tpu_custom_call.1} parent=35 // pred_check
              _
            $region42: #{tpu_custom_call.1} parent=35 // pred_check_branch
              %255 = sbr.rel (0) target = $region44
            $region43: #{tpu_custom_call.1} parent=35 // pred_region
              %s257 = ssub.s32 16, 1
              loop: start=0, step=1, limit=1
              $region45: #{tpu_custom_call.1} parent=43 // loop_pre_header
                _
              $region46: #{tpu_custom_call.1} parent=43 // loop_header
                %s259 = sphi 0, %s263
                %p260 = scmp.ge.s32.totalorder %s259, 1
                %s264 = sphi %s249, %s249
                %s265 = sphi %s244, %s244
              $region47: #{tpu_custom_call.1} parent=43 // loop_header_branch
                %262 = sbr.rel (%p260) target = $region51
              $region48: #{tpu_custom_call.1} parent=43 // loop_body
                %v266 = vld [vmem:[%s264] sm:%s257]
                %267 = vst [vmem:[%s265] sm:%s257] %v266
                %v268 = vld [vmem:[%s264 + $0x8] sm:%s257]
                %269 = vst [vmem:[%s265 + $0x4] sm:%s257] %v268
                %v270 = vld [vmem:[%s264 + $0x10] sm:%s257]
                %271 = vst [vmem:[%s265 + $0x8] sm:%s257] %v270
                %v272 = vld [vmem:[%s264 + $0x18] sm:%s257]
                %273 = vst [vmem:[%s265 + $0xc] sm:%s257] %v272
                %v274 = vld [vmem:[%s264 + $0x20] sm:%s257]
                %275 = vst [vmem:[%s265 + $0x10] sm:%s257] %v274
                %v276 = vld [vmem:[%s264 + $0x28] sm:%s257]
                %277 = vst [vmem:[%s265 + $0x14] sm:%s257] %v276
                %v278 = vld [vmem:[%s264 + $0x30] sm:%s257]
                %279 = vst [vmem:[%s265 + $0x18] sm:%s257] %v278
                %v280 = vld [vmem:[%s264 + $0x38] sm:%s257]
                %281 = vst [vmem:[%s265 + $0x1c] sm:%s257] %v280
              $region49: #{tpu_custom_call.1} parent=43 // loop_footer
                %s263 = sadd.s32 1, %s259
              $region50: #{tpu_custom_call.1} parent=43 // loop_footer_branch
                %258 = sbr.rel target = $region46
              $region51: #{tpu_custom_call.1} parent=43 // loop_exit
                _
            $region44: #{tpu_custom_call.1} parent=35 // pred_fallthru
              _
          $region36: #{tpu_custom_call.1} parent=31 // pred_fallthru
            _
          %318 = vnop
        $region32: #{tpu_custom_call.1} parent=23 // pred_fallthru
          _
        // Predicated region
        $region70: #{tpu_custom_call.1} parent=23 // pred_check
          %p319 = pneg %p133
        $region71: #{tpu_custom_call.1} parent=23 // pred_check_branch
          %321 = sbr.rel (%p319) target = $region73
        $region72: #{tpu_custom_call.1} parent=23 // pred_region
          %s322 = smul.u32 8, %s25
          %p323 = scmp.lt.s32.totalorder %s322, 31
          %s324 = scalar_select %p323, %s322, 31
          %s325 = smul.addr %s324, 8
          %s326 = scalar_lea.vmem %s3, %s325
          %s327 = smul.u32 8, %s25
        $region73: #{tpu_custom_call.1} parent=23 // pred_fallthru
          _
      $region24: #{tpu_custom_call.1} parent=5 // pred_fallthru
        _
      %p328 = scmp.le.s32.totalorder 1, %s17
      %p329 = scmp.lt.s32.totalorder %s17, 17
      %p330 = pnand %p328, %p329
      %p331 = pneg %p330
      // Predicated region
      $region74: #{tpu_custom_call.1} parent=5 // pred_check
        _
      $region75: #{tpu_custom_call.1} parent=5 // pred_check_branch
        %333 = sbr.rel (%p330) target = $region77
      $region76: #{tpu_custom_call.1} parent=5 // pred_region
        %s334 = ssub.s32 %s17, 1
        %s335 = sand.u32 %s51, 1
        %s336 = scalar_lea.sflag [#allocation4], %s335
        %s337 = sand.u32 %s51, 1
        %s338 = smul.addr %s337, 128
        %s339 = scalar_lea.vmem [#allocation3], %s338
        // Predicated region
        $region78: #{tpu_custom_call.1} parent=76 // pred_check
          %p340 = pneg %p64
        $region79: #{tpu_custom_call.1} parent=76 // pred_check_branch
          %342 = sbr.rel (%p340) target = $region81
        $region80: #{tpu_custom_call.1} parent=76 // pred_region
          %344 = dma.done %s336, 2048
        $region81: #{tpu_custom_call.1} parent=76 // pred_fallthru
          _
        %s345 = sand.u32 %s100, 1
        %s346 = sand.u32 %s100, 1
        %s347 = smul.addr %s346, 32
        %s348 = scalar_lea.vmem [#allocation6], %s347
        // Predicated region
        $region82: #{tpu_custom_call.1} parent=76 // pred_check
          %p349 = pneg %p113
        $region83: #{tpu_custom_call.1} parent=76 // pred_check_branch
          %351 = sbr.rel (%p349) target = $region85
        $region84: #{tpu_custom_call.1} parent=76 // pred_region
          _
        $region85: #{tpu_custom_call.1} parent=76 // pred_fallthru
          _
        %s352 = sand.u32 %s51, 1
        %s353 = scalar_lea.sflag [#allocation4], %s352
        %s354 = sand.u32 %s51, 1
        %s355 = smul.addr %s354, 128
        %s356 = scalar_lea.vmem [#allocation3], %s355
        %p357 = pneg %p64
        %p358 = pneg %p61
        %p359 = pneg %p85
        %p360 = pneg %p82
        %s361 = sand.u32 %s100, 1
        %s362 = sand.u32 %s100, 1
        %s363 = smul.addr %s362, 32
        %s364 = scalar_lea.vmem [#allocation6], %s363
        %p365 = pneg %p113
        %p366 = pneg %p110
        %s367 = smul.u32 8, %s28
        %p368 = scmp.lt.s32.totalorder %s367, 31
        %s369 = scalar_select %p368, %s367, 31
        %s370 = smul.addr %s369, 8
        %s371 = scalar_lea.vmem %s3, %s370
        %p372 = pneg %p139
        %p373 = pneg %p136
        %p374 = pneg %p160
        %p375 = pneg %p157
        %p376 = pneg %p188
        %p377 = pneg %p185
        %s378 = sand.u32 %s175, 1
        %s379 = scalar_lea.sflag [#allocation5], %s378
        %s380 = sand.u32 %s175, 1
        %s381 = smul.addr %s380, 128
        %s382 = scalar_lea.vmem [#allocation7], %s381
        %s383 = smul.u32 16, %s29
        %s384 = smul.u32 8, %s28
        %s385 = smul.u32 8, %s28
        %p386 = scmp.lt.s32.totalorder %s385, 31
        %s387 = scalar_select %p386, %s385, 31
        %s388 = smul.addr %s387, 8
        %s389 = scalar_lea.vmem %s3, %s388
        %s390 = smul.u32 8, %s28
        %s391 = smul.u32 8, %s28
        %p393 = scmp.eq.s32.totalorder %s29, 0
        // Predicated region
        $region86: #{tpu_custom_call.1} parent=76 // pred_check
          %p394 = pneg %p393
        $region87: #{tpu_custom_call.1} parent=76 // pred_check_branch
          %396 = sbr.rel (%p394) target = $region89
        $region88: #{tpu_custom_call.1} parent=76 // pred_region
          %vm397 = vcmask 523264
          %398 = vst.msk [vmem:[#allocation2] sm:$0xff] %vm397, 0.0
          %399 = vst.msk [vmem:[#allocation2 + $0x8] sm:$0xff] %vm397, 0.0
          %400 = vst.msk [vmem:[#allocation2 + $0x10] sm:$0xff] %vm397, 0.0
          %401 = vst.msk [vmem:[#allocation2 + $0x18] sm:$0xff] %vm397, 0.0
          %402 = vst.msk [vmem:[#allocation2 + $0x20] sm:$0xff] %vm397, 0.0
          %403 = vst.msk [vmem:[#allocation2 + $0x28] sm:$0xff] %vm397, 0.0
          %404 = vst.msk [vmem:[#allocation2 + $0x30] sm:$0xff] %vm397, 0.0
          %405 = vst.msk [vmem:[#allocation2 + $0x38] sm:$0xff] %vm397, 0.0
        $region89: #{tpu_custom_call.1} parent=76 // pred_fallthru
          _
        %v406 = vld [vmem:[%s339] sm:$0xff]
        %v407 = vld [vmem:[%s339 + $0x8] sm:$0xff]
        %v408 = vld [vmem:[%s339 + $0x10] sm:$0xff]
        %v409 = vld [vmem:[%s339 + $0x18] sm:$0xff]
        %v410 = vld [vmem:[%s339 + $0x20] sm:$0xff]
        %v411 = vld [vmem:[%s339 + $0x28] sm:$0xff]
        %v412 = vld [vmem:[%s339 + $0x30] sm:$0xff]
        %v413 = vld [vmem:[%s339 + $0x38] sm:$0xff]
        %v414 = vld [vmem:[%s339 + $0x40] sm:$0xff]
        %v415 = vld [vmem:[%s339 + $0x48] sm:$0xff]
        %v416 = vld [vmem:[%s339 + $0x50] sm:$0xff]
        %v417 = vld [vmem:[%s339 + $0x58] sm:$0xff]
        %v418 = vld [vmem:[%s339 + $0x60] sm:$0xff]
        %v419 = vld [vmem:[%s339 + $0x68] sm:$0xff]
        %v420 = vld [vmem:[%s339 + $0x70] sm:$0xff]
        %v421 = vld [vmem:[%s339 + $0x78] sm:$0xff]
        %v422 = vld [vmem:[%s1] sm:$0xf]
        %v423 = vld [vmem:[%s1 + $0x4] sm:$0xf]
        %v424 = vld [vmem:[%s1 + $0x8] sm:$0xf]
        %v425 = vld [vmem:[%s1 + $0xc] sm:$0xf]
        %v426 = vld [vmem:[%s1 + $0x10] sm:$0xf]
        %v427 = vld [vmem:[%s1 + $0x14] sm:$0xf]
        %v428 = vld [vmem:[%s1 + $0x18] sm:$0xf]
        %v429 = vld [vmem:[%s1 + $0x1c] sm:$0xf]
        %v430 = vld [vmem:[%s1 + $0x20] sm:$0xf]
        %v431 = vld [vmem:[%s1 + $0x24] sm:$0xf]
        %v432 = vld [vmem:[%s1 + $0x28] sm:$0xf]
        %v433 = vld [vmem:[%s1 + $0x2c] sm:$0xf]
        %v434 = vld [vmem:[%s1 + $0x30] sm:$0xf]
        %v435 = vld [vmem:[%s1 + $0x34] sm:$0xf]
        %v436 = vld [vmem:[%s1 + $0x38] sm:$0xf]
        %v437 = vld [vmem:[%s1 + $0x3c] sm:$0xf]
        %v438 = vld [vmem:[%s1 + $0x40] sm:$0xf]
        %v439 = vld [vmem:[%s1 + $0x44] sm:$0xf]
        %v440 = vld [vmem:[%s1 + $0x48] sm:$0xf]
        %v441 = vld [vmem:[%s1 + $0x4c] sm:$0xf]
        %v442 = vld [vmem:[%s1 + $0x50] sm:$0xf]
        %v443 = vld [vmem:[%s1 + $0x54] sm:$0xf]
        %v444 = vld [vmem:[%s1 + $0x58] sm:$0xf]
        %v445 = vld [vmem:[%s1 + $0x5c] sm:$0xf]
        %v446 = vld [vmem:[%s1 + $0x60] sm:$0xf]
        %v447 = vld [vmem:[%s1 + $0x64] sm:$0xf]
        %v448 = vld [vmem:[%s1 + $0x68] sm:$0xf]
        %v449 = vld [vmem:[%s1 + $0x6c] sm:$0xf]
        %v450 = vld [vmem:[%s1 + $0x70] sm:$0xf]
        %v451 = vld [vmem:[%s1 + $0x74] sm:$0xf]
        %v452 = vld [vmem:[%s1 + $0x78] sm:$0xf]
        %v453 = vld [vmem:[%s1 + $0x7c] sm:$0xf]
        %v470 = vunpack.c.l.b16 %v406
        %v471 = vunpack.c.h.b16 %v406
        %v472 = vunpack.c.l.b16 %v407
        %v473 = vunpack.c.h.b16 %v407
        %v474 = vunpack.c.l.b16 %v408
        %v475 = vunpack.c.h.b16 %v408
        %v476 = vunpack.c.l.b16 %v409
        %v477 = vunpack.c.h.b16 %v409
        %v478 = vunpack.c.l.b16 %v410
        %v479 = vunpack.c.h.b16 %v410
        %v480 = vunpack.c.l.b16 %v411
        %v481 = vunpack.c.h.b16 %v411
        %v482 = vunpack.c.l.b16 %v412
        %v483 = vunpack.c.h.b16 %v412
        %v484 = vunpack.c.l.b16 %v413
        %v485 = vunpack.c.h.b16 %v413
        %v486 = vunpack.c.l.b16 %v414
        %v487 = vunpack.c.h.b16 %v414
        %v488 = vunpack.c.l.b16 %v415
        %v489 = vunpack.c.h.b16 %v415
        %v490 = vunpack.c.l.b16 %v416
        %v491 = vunpack.c.h.b16 %v416
        %v492 = vunpack.c.l.b16 %v417
        %v493 = vunpack.c.h.b16 %v417
        %v494 = vunpack.c.l.b16 %v418
        %v495 = vunpack.c.h.b16 %v418
        %v496 = vunpack.c.l.b16 %v419
        %v497 = vunpack.c.h.b16 %v419
        %v498 = vunpack.c.l.b16 %v420
        %v499 = vunpack.c.h.b16 %v420
        %v500 = vunpack.c.l.b16 %v421
        %v501 = vunpack.c.h.b16 %v421
        %v502 = vpack.c.b16 %v472, %v470
        %v503 = vpack.c.b16 %v473, %v471
        %v504 = vpack.c.b16 %v476, %v474
        %v505 = vpack.c.b16 %v477, %v475
        %v506 = vpack.c.b16 %v480, %v478
        %v507 = vpack.c.b16 %v481, %v479
        %v508 = vpack.c.b16 %v484, %v482
        %v509 = vpack.c.b16 %v485, %v483
        %v510 = vpack.c.b16 %v488, %v486
        %v511 = vpack.c.b16 %v489, %v487
        %v512 = vpack.c.b16 %v492, %v490
        %v513 = vpack.c.b16 %v493, %v491
        %v514 = vpack.c.b16 %v496, %v494
        %v515 = vpack.c.b16 %v497, %v495
        %v516 = vpack.c.b16 %v500, %v498
        %v517 = vpack.c.b16 %v501, %v499
        %v566 = vunpack.c.l.b16 %v422
        %v567 = vunpack.c.l.b16 %v423
        %v568 = vunpack.c.l.b16 %v424
        %v569 = vunpack.c.l.b16 %v425
        %v570 = vunpack.c.l.b16 %v426
        %v571 = vunpack.c.l.b16 %v427
        %v572 = vunpack.c.l.b16 %v428
        %v573 = vunpack.c.l.b16 %v429
        %v574 = vunpack.c.l.b16 %v430
        %v575 = vunpack.c.l.b16 %v431
        %v576 = vunpack.c.l.b16 %v432
        %v577 = vunpack.c.l.b16 %v433
        %v578 = vunpack.c.l.b16 %v434
        %v579 = vunpack.c.l.b16 %v435
        %v580 = vunpack.c.l.b16 %v436
        %v581 = vunpack.c.l.b16 %v437
        %v582 = vunpack.c.l.b16 %v438
        %v583 = vunpack.c.l.b16 %v439
        %v584 = vunpack.c.l.b16 %v440
        %v585 = vunpack.c.l.b16 %v441
        %v586 = vunpack.c.l.b16 %v442
        %v587 = vunpack.c.l.b16 %v443
        %v588 = vunpack.c.l.b16 %v444
        %v589 = vunpack.c.l.b16 %v445
        %v590 = vunpack.c.l.b16 %v446
        %v591 = vunpack.c.l.b16 %v447
        %v592 = vunpack.c.l.b16 %v448
        %v593 = vunpack.c.l.b16 %v449
        %v594 = vunpack.c.l.b16 %v450
        %v595 = vunpack.c.l.b16 %v451
        %v596 = vunpack.c.l.b16 %v452
        %v597 = vunpack.c.l.b16 %v453
        %v598 = vpack.c.b16 %v567, %v566
        %v599 = vpack.c.b16 %v569, %v568
        %v600 = vpack.c.b16 %v571, %v570
        %v601 = vpack.c.b16 %v573, %v572
        %v602 = vpack.c.b16 %v575, %v574
        %v603 = vpack.c.b16 %v577, %v576
        %v604 = vpack.c.b16 %v579, %v578
        %v605 = vpack.c.b16 %v581, %v580
        %v606 = vpack.c.b16 %v583, %v582
        %v607 = vpack.c.b16 %v585, %v584
        %v608 = vpack.c.b16 %v587, %v586
        %v609 = vpack.c.b16 %v589, %v588
        %v610 = vpack.c.b16 %v591, %v590
        %v611 = vpack.c.b16 %v593, %v592
        %v612 = vpack.c.b16 %v595, %v594
        %v613 = vpack.c.b16 %v597, %v596
        %630 = vmatpush.bf16.msra.mxu0 %v605
        %631 = vmatpush.bf16.msra.mxu0 %v604
        %632 = vmatpush.bf16.msra.mxu0 %v603
        %633 = vmatpush.bf16.msra.mxu0 %v602
        %634 = vmatpush.bf16.msra.mxu0 %v601
        %635 = vmatpush.bf16.msra.mxu0 %v600
        %636 = vmatpush.bf16.msra.mxu0 %v599
        %637 = vmatpush.bf16.msra.mxu0 %v598
        %638 = vmatmul.bf16.gmra.mxu0 %v502
        %v639 = vpop.f32.mrf.mxu0
        %v640 = vadd.f32 0.0, %v639
        %v641 = vpop.f32.mrf.mxu0
        %v642 = vadd.f32 0.0, %v641
        %643 = vmatmul.bf16.gmra.mxu0 %v504
        %v644 = vpop.f32.mrf.mxu0
        %v645 = vadd.f32 0.0, %v644
        %v646 = vpop.f32.mrf.mxu0
        %v647 = vadd.f32 0.0, %v646
        %648 = vmatmul.bf16.gmra.mxu0 %v506
        %v649 = vpop.f32.mrf.mxu0
        %v650 = vadd.f32 0.0, %v649
        %v651 = vpop.f32.mrf.mxu0
        %v652 = vadd.f32 0.0, %v651
        %653 = vmatmul.bf16.gmra.mxu0 %v508
        %v654 = vpop.f32.mrf.mxu0
        %v655 = vadd.f32 0.0, %v654
        %v656 = vpop.f32.mrf.mxu0
        %v657 = vadd.f32 0.0, %v656
        %658 = vmatmul.bf16.gmra.mxu0 %v510
        %v659 = vpop.f32.mrf.mxu0
        %v660 = vadd.f32 0.0, %v659
        %v661 = vpop.f32.mrf.mxu0
        %v662 = vadd.f32 0.0, %v661
        %663 = vmatmul.bf16.gmra.mxu0 %v512
        %v664 = vpop.f32.mrf.mxu0
        %v665 = vadd.f32 0.0, %v664
        %v666 = vpop.f32.mrf.mxu0
        %v667 = vadd.f32 0.0, %v666
        %668 = vmatmul.bf16.gmra.mxu0 %v514
        %v669 = vpop.f32.mrf.mxu0
        %v670 = vadd.f32 0.0, %v669
        %v671 = vpop.f32.mrf.mxu0
        %v672 = vadd.f32 0.0, %v671
        %673 = vmatmul.bf16.gmra.mxu0 %v516
        %v674 = vpop.f32.mrf.mxu0
        %v675 = vadd.f32 0.0, %v674
        %v676 = vpop.f32.mrf.mxu0
        %v677 = vadd.f32 0.0, %v676
        %678 = vdwg.mxu0
        %679 = vmatpush.bf16.msra.mxu0 %v613
        %680 = vmatpush.bf16.msra.mxu0 %v612
        %681 = vmatpush.bf16.msra.mxu0 %v611
        %682 = vmatpush.bf16.msra.mxu0 %v610
        %683 = vmatpush.bf16.msra.mxu0 %v609
        %684 = vmatpush.bf16.msra.mxu0 %v608
        %685 = vmatpush.bf16.msra.mxu0 %v607
        %686 = vmatpush.bf16.msra.mxu0 %v606
        %687 = vmatmul.bf16.gmra.mxu0 %v503
        %v688 = vpop.f32.mrf.mxu0
        %v689 = vadd.f32 %v640, %v688
        %v690 = vpop.f32.mrf.mxu0
        %v691 = vadd.f32 %v642, %v690
        %692 = vmatmul.bf16.gmra.mxu0 %v505
        %v693 = vpop.f32.mrf.mxu0
        %v694 = vadd.f32 %v645, %v693
        %v695 = vpop.f32.mrf.mxu0
        %v696 = vadd.f32 %v647, %v695
        %697 = vmatmul.bf16.gmra.mxu0 %v507
        %v698 = vpop.f32.mrf.mxu0
        %v699 = vadd.f32 %v650, %v698
        %v700 = vpop.f32.mrf.mxu0
        %v701 = vadd.f32 %v652, %v700
        %702 = vmatmul.bf16.gmra.mxu0 %v509
        %v703 = vpop.f32.mrf.mxu0
        %v704 = vadd.f32 %v655, %v703
        %v705 = vpop.f32.mrf.mxu0
        %v706 = vadd.f32 %v657, %v705
        %707 = vmatmul.bf16.gmra.mxu0 %v511
        %v708 = vpop.f32.mrf.mxu0
        %v709 = vadd.f32 %v660, %v708
        %v710 = vpop.f32.mrf.mxu0
        %v711 = vadd.f32 %v662, %v710
        %712 = vmatmul.bf16.gmra.mxu0 %v513
        %v713 = vpop.f32.mrf.mxu0
        %v714 = vadd.f32 %v665, %v713
        %v715 = vpop.f32.mrf.mxu0
        %v716 = vadd.f32 %v667, %v715
        %717 = vmatmul.bf16.gmra.mxu0 %v515
        %v718 = vpop.f32.mrf.mxu0
        %v719 = vadd.f32 %v670, %v718
        %v720 = vpop.f32.mrf.mxu0
        %v721 = vadd.f32 %v672, %v720
        %722 = vmatmul.bf16.gmra.mxu0 %v517
        %v723 = vpop.f32.mrf.mxu0
        %v724 = vadd.f32 %v675, %v723
        %v725 = vpop.f32.mrf.mxu0
        %v726 = vadd.f32 %v677, %v725
        %727 = vdwg.mxu0
        %v728 = vld [vmem:[#allocation2] sm:$0xff]
        %v729 = vld [vmem:[#allocation2 + $0x8] sm:$0xff]
        %v730 = vld [vmem:[#allocation2 + $0x10] sm:$0xff]
        %v731 = vld [vmem:[#allocation2 + $0x18] sm:$0xff]
        %v732 = vld [vmem:[#allocation2 + $0x20] sm:$0xff]
        %v733 = vld [vmem:[#allocation2 + $0x28] sm:$0xff]
        %v734 = vld [vmem:[#allocation2 + $0x30] sm:$0xff]
        %v735 = vld [vmem:[#allocation2 + $0x38] sm:$0xff]
        %v736 = vld [vmem:[%s348] sm:$0xf]
        %v737 = vld [vmem:[%s348 + $0x4] sm:$0xf]
        %v738 = vld [vmem:[%s348 + $0x8] sm:$0xf]
        %v739 = vld [vmem:[%s348 + $0xc] sm:$0xf]
        %v740 = vld [vmem:[%s348 + $0x10] sm:$0xf]
        %v741 = vld [vmem:[%s348 + $0x14] sm:$0xf]
        %v742 = vld [vmem:[%s348 + $0x18] sm:$0xf]
        %v743 = vld [vmem:[%s348 + $0x1c] sm:$0xf]
        %v744 = vpack.c.bf16 %v691, %v689
        %v745 = vpack.c.bf16 %v696, %v694
        %v746 = vpack.c.bf16 %v701, %v699
        %v747 = vpack.c.bf16 %v706, %v704
        %v748 = vpack.c.bf16 %v711, %v709
        %v749 = vpack.c.bf16 %v716, %v714
        %v750 = vpack.c.bf16 %v721, %v719
        %v751 = vpack.c.bf16 %v726, %v724
        %v760 = vunpack.c.l.b16 %v736
        %v761 = vunpack.c.l.b16 %v737
        %v762 = vunpack.c.l.b16 %v738
        %v763 = vunpack.c.l.b16 %v739
        %v764 = vunpack.c.l.b16 %v740
        %v765 = vunpack.c.l.b16 %v741
        %v766 = vunpack.c.l.b16 %v742
        %v767 = vunpack.c.l.b16 %v743
        %v768 = vpack.c.b16 %v761, %v760
        %v769 = vpack.c.b16 %v763, %v762
        %v770 = vpack.c.b16 %v765, %v764
        %v771 = vpack.c.b16 %v767, %v766
        %776 = vmatpush.bf16.msra.mxu0 %v751
        %777 = vmatpush.bf16.msra.mxu0 %v750
        %778 = vmatpush.bf16.msra.mxu0 %v749
        %779 = vmatpush.bf16.msra.mxu0 %v748
        %780 = vmatpush.bf16.msra.mxu0 %v747
        %781 = vmatpush.bf16.msra.mxu0 %v746
        %782 = vmatpush.bf16.msra.mxu0 %v745
        %783 = vmatpush.bf16.msra.mxu0 %v744
        %784 = vmatmul.bf16.gmra.mxu0 %v768
        %v785 = vpop.f32.mrf.mxu0
        %v786 = vadd.f32 0.0, %v785
        %v787 = vpop.f32.mrf.mxu0
        %v788 = vadd.f32 0.0, %v787
        %789 = vmatmul.bf16.gmra.mxu0 %v769
        %v790 = vpop.f32.mrf.mxu0
        %v791 = vadd.f32 0.0, %v790
        %v792 = vpop.f32.mrf.mxu0
        %v793 = vadd.f32 0.0, %v792
        %794 = vmatmul.bf16.gmra.mxu0 %v770
        %v795 = vpop.f32.mrf.mxu0
        %v796 = vadd.f32 0.0, %v795
        %v797 = vpop.f32.mrf.mxu0
        %v798 = vadd.f32 0.0, %v797
        %799 = vmatmul.bf16.gmra.mxu0 %v771
        %v800 = vpop.f32.mrf.mxu0
        %v801 = vadd.f32 0.0, %v800
        %v802 = vpop.f32.mrf.mxu0
        %v803 = vadd.f32 0.0, %v802
        %804 = vdwg.mxu0
        %v805 = vadd.f32 %v728, %v786
        %v806 = vadd.f32 %v729, %v788
        %v807 = vadd.f32 %v730, %v791
        %v808 = vadd.f32 %v731, %v793
        %v809 = vadd.f32 %v732, %v796
        %v810 = vadd.f32 %v733, %v798
        %v811 = vadd.f32 %v734, %v801
        %v812 = vadd.f32 %v735, %v803
        %vm813 = vcmask 523264
        %814 = vst.msk [vmem:[#allocation2] sm:$0xff] %vm813, %v805
        %815 = vst.msk [vmem:[#allocation2 + $0x8] sm:$0xff] %vm813, %v806
        %816 = vst.msk [vmem:[#allocation2 + $0x10] sm:$0xff] %vm813, %v807
        %817 = vst.msk [vmem:[#allocation2 + $0x18] sm:$0xff] %vm813, %v808
        %818 = vst.msk [vmem:[#allocation2 + $0x20] sm:$0xff] %vm813, %v809
        %819 = vst.msk [vmem:[#allocation2 + $0x28] sm:$0xff] %vm813, %v810
        %820 = vst.msk [vmem:[#allocation2 + $0x30] sm:$0xff] %vm813, %v811
        %821 = vst.msk [vmem:[#allocation2 + $0x38] sm:$0xff] %vm813, %v812
        %p822 = scmp.eq.s32.totalorder %s29, 1
        // Predicated region
        $region90: #{tpu_custom_call.1} parent=76 // pred_check
          %p823 = pneg %p822
        $region91: #{tpu_custom_call.1} parent=76 // pred_check_branch
          %825 = sbr.rel (%p823) target = $region93
        $region92: #{tpu_custom_call.1} parent=76 // pred_region
          %v826 = vld [vmem:[#allocation2] sm:$0xff]
          %v827 = vld [vmem:[#allocation2 + $0x8] sm:$0xff]
          %v828 = vld [vmem:[#allocation2 + $0x10] sm:$0xff]
          %v829 = vld [vmem:[#allocation2 + $0x18] sm:$0xff]
          %v830 = vld [vmem:[#allocation2 + $0x20] sm:$0xff]
          %v831 = vld [vmem:[#allocation2 + $0x28] sm:$0xff]
          %v832 = vld [vmem:[#allocation2 + $0x30] sm:$0xff]
          %v833 = vld [vmem:[#allocation2 + $0x38] sm:$0xff]
          %v834 = vld [vmem:[%s389] sm:$0xff]
          %v835 = vld [vmem:[%s389 + $0x8] sm:$0xff]
          %v836 = vld [vmem:[%s389 + $0x10] sm:$0xff]
          %v837 = vld [vmem:[%s389 + $0x18] sm:$0xff]
          %v838 = vld [vmem:[%s389 + $0x20] sm:$0xff]
          %v839 = vld [vmem:[%s389 + $0x28] sm:$0xff]
          %v840 = vld [vmem:[%s389 + $0x30] sm:$0xff]
          %v841 = vld [vmem:[%s389 + $0x38] sm:$0xff]
          %v842 = vadd.f32 %v826, %v834
          %v843 = vadd.f32 %v827, %v835
          %v844 = vadd.f32 %v828, %v836
          %v845 = vadd.f32 %v829, %v837
          %v846 = vadd.f32 %v830, %v838
          %v847 = vadd.f32 %v831, %v839
          %v848 = vadd.f32 %v832, %v840
          %v849 = vadd.f32 %v833, %v841
          %v850 = vmax.f32 %v842, 0.0
          %v851 = vmax.f32 %v843, 0.0
          %v852 = vmax.f32 %v844, 0.0
          %v853 = vmax.f32 %v845, 0.0
          %v854 = vmax.f32 %v846, 0.0
          %v855 = vmax.f32 %v847, 0.0
          %v856 = vmax.f32 %v848, 0.0
          %v857 = vmax.f32 %v849, 0.0
          %v858 = vpack.c.bf16 %v851, %v850
          %v859 = vpack.c.bf16 %v853, %v852
          %v860 = vpack.c.bf16 %v855, %v854
          %v861 = vpack.c.bf16 %v857, %v856
          %v862 = vld [vmem:[%s4] sm:$0xff]
          %v863 = vld [vmem:[%s4 + $0x8] sm:$0xff]
          %v864 = vld [vmem:[%s4 + $0x10] sm:$0xff]
          %v865 = vld [vmem:[%s4 + $0x18] sm:$0xff]
          %v866 = vld [vmem:[%s4 + $0x20] sm:$0xff]
          %v867 = vld [vmem:[%s4 + $0x28] sm:$0xff]
          %v868 = vld [vmem:[%s4 + $0x30] sm:$0xff]
          %v869 = vld [vmem:[%s4 + $0x38] sm:$0xff]
          %v878 = vunpack.c.l.b16 %v862
          %v879 = vunpack.c.h.b16 %v862
          %v880 = vunpack.c.l.b16 %v863
          %v881 = vunpack.c.h.b16 %v863
          %v882 = vunpack.c.l.b16 %v864
          %v883 = vunpack.c.h.b16 %v864
          %v884 = vunpack.c.l.b16 %v865
          %v885 = vunpack.c.h.b16 %v865
          %v886 = vunpack.c.l.b16 %v866
          %v887 = vunpack.c.h.b16 %v866
          %v888 = vunpack.c.l.b16 %v867
          %v889 = vunpack.c.h.b16 %v867
          %v890 = vunpack.c.l.b16 %v868
          %v891 = vunpack.c.h.b16 %v868
          %v892 = vunpack.c.l.b16 %v869
          %v893 = vunpack.c.h.b16 %v869
          %v894 = vpack.c.b16 %v880, %v878
          %v895 = vpack.c.b16 %v881, %v879
          %v896 = vpack.c.b16 %v884, %v882
          %v897 = vpack.c.b16 %v885, %v883
          %v898 = vpack.c.b16 %v888, %v886
          %v899 = vpack.c.b16 %v889, %v887
          %v900 = vpack.c.b16 %v892, %v890
          %v901 = vpack.c.b16 %v893, %v891
          %v911 = vsel %vm813, %v858, 0
          %v914 = vsel %vm813, %v859, 0
          %v917 = vsel %vm813, %v860, 0
          %v920 = vsel %vm813, %v861, 0
          %922 = vmatpush.bf16.msra.mxu0 0
          %923 = vmatpush.bf16.msra.mxu0 0
          %924 = vmatpush.bf16.msra.mxu0 0
          %925 = vmatpush.bf16.msra.mxu0 0
          %926 = vmatpush.bf16.msra.mxu0 %v900
          %927 = vmatpush.bf16.msra.mxu0 %v898
          %928 = vmatpush.bf16.msra.mxu0 %v896
          %929 = vmatpush.bf16.msra.mxu0 %v894
          %930 = vmatmul.bf16.gmra.mxu0 %v911
          %v931 = vpop.f32.mrf.mxu0
          %v932 = vadd.f32 0.0, %v931
          %v933 = vpop.f32.mrf.mxu0
          %v934 = vadd.f32 0.0, %v933
          %935 = vmatmul.bf16.gmra.mxu0 %v914
          %v936 = vpop.f32.mrf.mxu0
          %v937 = vadd.f32 0.0, %v936
          %v938 = vpop.f32.mrf.mxu0
          %v939 = vadd.f32 0.0, %v938
          %940 = vmatmul.bf16.gmra.mxu0 %v917
          %v941 = vpop.f32.mrf.mxu0
          %v942 = vadd.f32 0.0, %v941
          %v943 = vpop.f32.mrf.mxu0
          %v944 = vadd.f32 0.0, %v943
          %945 = vmatmul.bf16.gmra.mxu0 %v920
          %v946 = vpop.f32.mrf.mxu0
          %v947 = vadd.f32 0.0, %v946
          %v948 = vpop.f32.mrf.mxu0
          %v949 = vadd.f32 0.0, %v948
          %950 = vdwg.mxu0
          %951 = vmatpush.bf16.msra.mxu0 0
          %952 = vmatpush.bf16.msra.mxu0 0
          %953 = vmatpush.bf16.msra.mxu0 0
          %954 = vmatpush.bf16.msra.mxu0 0
          %955 = vmatpush.bf16.msra.mxu0 %v901
          %956 = vmatpush.bf16.msra.mxu0 %v899
          %957 = vmatpush.bf16.msra.mxu0 %v897
          %958 = vmatpush.bf16.msra.mxu0 %v895
          %959 = vmatmul.bf16.gmra.mxu0 %v911
          %v960 = vpop.f32.mrf.mxu0
          %v961 = vadd.f32 0.0, %v960
          %v962 = vpop.f32.mrf.mxu0
          %v963 = vadd.f32 0.0, %v962
          %964 = vmatmul.bf16.gmra.mxu0 %v914
          %v965 = vpop.f32.mrf.mxu0
          %v966 = vadd.f32 0.0, %v965
          %v967 = vpop.f32.mrf.mxu0
          %v968 = vadd.f32 0.0, %v967
          %969 = vmatmul.bf16.gmra.mxu0 %v917
          %v970 = vpop.f32.mrf.mxu0
          %v971 = vadd.f32 0.0, %v970
          %v972 = vpop.f32.mrf.mxu0
          %v973 = vadd.f32 0.0, %v972
          %974 = vmatmul.bf16.gmra.mxu0 %v920
          %v975 = vpop.f32.mrf.mxu0
          %v976 = vadd.f32 0.0, %v975
          %v977 = vpop.f32.mrf.mxu0
          %v978 = vadd.f32 0.0, %v977
          %979 = vdwg.mxu0
          %980 = vst [vmem:[%s382] sm:$0xff] %v932
          %981 = vst [vmem:[%s382 + $0x8] sm:$0xff] %v961
          %982 = vst [vmem:[%s382 + $0x10] sm:$0xff] %v934
          %983 = vst [vmem:[%s382 + $0x18] sm:$0xff] %v963
          %984 = vst [vmem:[%s382 + $0x20] sm:$0xff] %v937
          %985 = vst [vmem:[%s382 + $0x28] sm:$0xff] %v966
          %986 = vst [vmem:[%s382 + $0x30] sm:$0xff] %v939
          %987 = vst [vmem:[%s382 + $0x38] sm:$0xff] %v968
          %988 = vst [vmem:[%s382 + $0x40] sm:$0xff] %v942
          %989 = vst [vmem:[%s382 + $0x48] sm:$0xff] %v971
          %990 = vst [vmem:[%s382 + $0x50] sm:$0xff] %v944
          %991 = vst [vmem:[%s382 + $0x58] sm:$0xff] %v973
          %992 = vst [vmem:[%s382 + $0x60] sm:$0xff] %v947
          %993 = vst [vmem:[%s382 + $0x68] sm:$0xff] %v976
          %994 = vst [vmem:[%s382 + $0x70] sm:$0xff] %v949
          %995 = vst [vmem:[%s382 + $0x78] sm:$0xff] %v978
        $region93: #{tpu_custom_call.1} parent=76 // pred_fallthru
          _
        %s996 = sand.u32 %s175, 1
        %s997 = scalar_lea.sflag [#allocation5], %s996
        %s998 = sand.u32 %s175, 1
        %s999 = smul.addr %s998, 128
        %s1000 = scalar_lea.vmem [#allocation7], %s999
        // Predicated region
        $region94: #{tpu_custom_call.1} parent=76 // pred_check
          %p1001 = pneg %p185
        $region95: #{tpu_custom_call.1} parent=76 // pred_check_branch
          %1003 = sbr.rel (%p1001) target = $region97
        $region96: #{tpu_custom_call.1} parent=76 // pred_region
          %s1004 = smul.u32 8, %s28
          %1006 = vsyncadd %s997, 0
          %s1007 = smul.addr %s1004, 2
          %s1008 = smul.addr %s27, 64
          %s1009 = sadd.s32 %s1007, %s1008
          %s1010 = smul.addr %s1009, 8
          %s1011 = scalar_lea.hbm %s5, %s1010
          %s1012 = sshll.u32 %s1000, 4
          %s1013 = int_to_ptr.vmem [resolvable:$true] %s1012
          %s1014 = sshll.u32 %s1011, 4
          %s1015 = int_to_ptr.hbm [resolvable:$true] %s1014
          %1020 = dma.vmem_to_hbm [thread:$0]  %s1013, 2048, %s1015, %s997, 256, 256, 16
        $region97: #{tpu_custom_call.1} parent=76 // pred_fallthru
          _
      $region77: #{tpu_custom_call.1} parent=5 // pred_fallthru
        _
      %p1021 = scmp.le.s32.totalorder 2, %s17
      // Predicated region
      $region98: #{tpu_custom_call.1} parent=5 // pred_check
        %p1022 = pneg %p1021
      $region99: #{tpu_custom_call.1} parent=5 // pred_check_branch
        %1024 = sbr.rel (%p1022) target = $region101
      $region100: #{tpu_custom_call.1} parent=5 // pred_region
        %s1025 = ssub.s32 %s17, 2
        // Predicated region
        $region102: #{tpu_custom_call.1} parent=100 // pred_check
          %p1026 = pneg %p191
        $region103: #{tpu_custom_call.1} parent=100 // pred_check_branch
          %1028 = sbr.rel (%p1026) target = $region105
        $region104: #{tpu_custom_call.1} parent=100 // pred_region
          %s1029 = sand.u32 %s176, 1
          %s1030 = scalar_lea.sflag [#allocation5], %s1029
          %s1031 = sand.u32 %s176, 1
          %s1032 = smul.addr %s1031, 128
          %s1033 = scalar_lea.vmem [#allocation7], %s1032
          %1035 = dma.done %s1030, 2048
        $region105: #{tpu_custom_call.1} parent=100 // pred_fallthru
          _
      $region101: #{tpu_custom_call.1} parent=5 // pred_fallthru
        _
    $region6: #{tpu_custom_call.1} parent=1 // loop_footer
      %s21 = sadd.s32 1, %s17
    $region7: #{tpu_custom_call.1} parent=1 // loop_footer_branch
      %16 = sbr.rel target = $region3
    $region8: #{tpu_custom_call.1} parent=1 // loop_exit
      _
    %1036 = vsyncpa [#allocation4], 1
    %s1037 = scalar_lea.sflag [#allocation4], 1
    %1038 = vsyncpa %s1037, 1
    %1039 = vsyncpa [#allocation5], 1
    %s1040 = scalar_lea.sflag [#allocation5], 1
    %1041 = vsyncpa %s1040, 1

</llo_original>
